<compile_context>
chip_gen: v5e
topology: v5e:2x2
jax: 0.10.0
libtpu: 0.0.40
codegen_flags: <defaults>
</compile_context>

<pallas_src>
import functools

import jax
import jax.numpy as jnp
from jax.experimental import pallas as pl
from jax.experimental.pallas import tpu as pltpu


def _round_up(n, m):
    return ((n + m - 1) // m) * m


# ----------------------------- kernel -------------------------------------

def _classifier_kernel(x_ref, w_ref, b_ref, out_ref, *, d, head_w):
    # fc1 + ReLU       (x is [B_pad, d]; W1 lives in slab columns [0, d))
    h = jnp.dot(x_ref[...], w_ref[:, 0:d],
                preferred_element_type=jnp.float32) + b_ref[:, 0:d]
    h = jnp.maximum(h, 0.0)

    # fc2 + (Dropout == identity in eval) + ReLU
    h = jnp.dot(h, w_ref[:, d:2 * d],
                preferred_element_type=jnp.float32) + b_ref[:, d:2 * d]
    h = jnp.maximum(h, 0.0)

    # fc3 + (Dropout == identity in eval) + ReLU
    h = jnp.dot(h, w_ref[:, 2 * d:3 * d],
                preferred_element_type=jnp.float32) + b_ref[:, 2 * d:3 * d]
    h = jnp.maximum(h, 0.0)

    # fused azimuth|elevation head + sigmoid (exp on EUP, approx recip on EUP)
    logits = jnp.dot(h, w_ref[:, 3 * d:3 * d + head_w],
                     preferred_element_type=jnp.float32) + b_ref[:, 3 * d:3 * d + head_w]
    out_ref[...] = pl.reciprocal(1.0 + jnp.exp(-logits), approx=True)


# ----------------------------- packing ------------------------------------

def pack_params(params, config):
    """Pack all layer weights/biases into one lane-dense slab each.

    Slab column layout (all column groups 128-lane aligned):
      [0      , D      ) : fc1  W (rows: padded num_feature -> D)
      [D      , 2D     ) : fc2  W (rows: padded hidden      -> D)
      [2D     , 3D     ) : fc3  W
      [3D     , 3D+Hw  ) : [azimuth | elevation] fused head W, padded to Hw
    Zero padding is exact: padded input lanes / hidden lanes / head lanes
    contribute nothing to the un-padded outputs.
    """
    f = config["num_feature"]
    h = config["hidden_feature"]
    az = int(config["max_azimuth"] - config["min_azimuth"])
    el = int(config["max_elevation"] - config["min_elevation"])
    d = _round_up(max(f, h), 128)
    head_w = _round_up(az + el, 128)

    def pad_to(a, rows, cols):
        a = a.astype(jnp.float32)
        return jnp.pad(a, ((0, rows - a.shape[0]), (0, cols - a.shape[1])))

    w1, b1 = params["fc1"]
    w2, b2 = params["fc2"]
    w3, b3 = params["fc3"]
    wa, ba = params["azimuth"]
    we, be = params["elevation"]

    w_head = jnp.concatenate([wa, we], axis=1)          # [h, az+el]
    b_head = jnp.concatenate([ba, be], axis=1)          # [1, az+el]

    wslab = jnp.concatenate(
        [pad_to(w1, d, d), pad_to(w2, d, d), pad_to(w3, d, d),
         pad_to(w_head, d, head_w)], axis=1)            # [d, 3d + head_w]
    bslab = jnp.concatenate(
        [pad_to(b1, 1, d), pad_to(b2, 1, d), pad_to(b3, 1, d),
         pad_to(b_head, 1, head_w)], axis=1)            # [1, 3d + head_w]
    return wslab, bslab


# ----------------------------- wrapper -------------------------------------

def make_forward(config):
    f = config["num_feature"]
    h = config["hidden_feature"]
    az = int(config["max_azimuth"] - config["min_azimuth"])
    el = int(config["max_elevation"] - config["min_elevation"])
    d = _round_up(max(f, h), 128)
    head_w = _round_up(az + el, 128)

    kernel = functools.partial(_classifier_kernel, d=d, head_w=head_w)
    vmem_spec = pl.BlockSpec(memory_space=pltpu.MemorySpace.VMEM)

    @jax.jit
    def forward(x, wslab, bslab):
        b = x.shape[0]
        b_pad = _round_up(b, 8)
        x_pad = jnp.pad(x.astype(jnp.float32),
                        ((0, b_pad - b), (0, d - x.shape[1])))

        out = pl.pallas_call(
            kernel,
            out_shape=jax.ShapeDtypeStruct((b_pad, head_w), jnp.float32),
            in_specs=[vmem_spec, vmem_spec, vmem_spec],
            out_specs=vmem_spec,
        )(x_pad, wslab, bslab)

        azimuth = out[:b, :az]
        elevation = out[:b, az:az + el]
        return azimuth, elevation

    return forward


# ----------------------------- param init ----------------------------------

def _init_linear(key, fan_in, fan_out):
    """PyTorch nn.Linear default init: U(-1/sqrt(fan_in), 1/sqrt(fan_in)).

    Stored as W: [in, out], b: [1, out] so layers compute x @ W + b.
    """
    kw, kb = jax.random.split(key)
    bound = 1.0 / jnp.sqrt(jnp.float32(fan_in))
    w = jax.random.uniform(kw, (fan_in, fan_out), jnp.float32, -bound, bound)
    b = jax.random.uniform(kb, (1, fan_out), jnp.float32, -bound, bound)
    return w, b


def init_params(key, config):
    nf = config["num_feature"]
    hf = config["hidden_feature"]
    az_dim = int(config["max_azimuth"] - config["min_azimuth"])
    el_dim = int(config["max_elevation"] - config["min_elevation"])

    keys = jax.random.split(key, 5)
    return {
        "fc1": _init_linear(keys[0], nf, hf),
        "fc2": _init_linear(keys[1], hf, hf),
        "fc3": _init_linear(keys[2], hf, hf),
        "azimuth": _init_linear(keys[3], hf, az_dim),
        "elevation": _init_linear(keys[4], hf, el_dim),
    }


# ----------------------------- reference ------------------------------------

def reference_forward(x, params):
    def lin(a, wb):
        return a @ wb[0] + wb[1]
    h = jax.nn.relu(lin(x, params["fc1"]))
    h = jax.nn.relu(lin(h, params["fc2"]))
    h = jax.nn.relu(lin(h, params["fc3"]))
    return (jax.nn.sigmoid(lin(h, params["azimuth"])),
            jax.nn.sigmoid(lin(h, params["elevation"])))


# ----------------------------- main -----------------------------------------

if __name__ == "__main__":
    config = {
        "num_feature": 32,
        "hidden_feature": 64,
        "min_azimuth": 0,
        "max_azimuth": 360,
        "min_elevation": -90,
        "max_elevation": 90,
        "num_source": 1,
    }

    key = jax.random.PRNGKey(0)
    k_params, k_x = jax.random.split(key)

    params = init_params(k_params, config)
    x = jax.random.normal(k_x, (8, config["num_feature"]), jnp.float32)

    wslab, bslab = pack_params(params, config)
    forward = make_forward(config)

    azimuth, elevation = forward(x, wslab, bslab)
    jax.block_until_ready((azimuth, elevation))

    az_dim = int(config["max_azimuth"] - config["min_azimuth"])
    el_dim = int(config["max_elevation"] - config["min_elevation"])
    assert azimuth.shape == (8, az_dim)
    assert elevation.shape == (8, el_dim)

    # sigmoid range (tiny epsilon for the EUP approx-reciprocal)
    eps = 1e-2
    assert bool(jnp.all((azimuth >= -eps) & (azimuth <= 1.0 + eps)))
    assert bool(jnp.all((elevation >= -eps) & (elevation <= 1.0 + eps)))

    # numerical check against a pure-JAX f32 reference (lenient tolerance
    # accounts for the approximate reciprocal in the sigmoid epilogue).
    az_ref, el_ref = reference_forward(x, params)
    assert float(jnp.max(jnp.abs(azimuth - az_ref))) < 2e-2
    assert float(jnp.max(jnp.abs(elevation - el_ref))) < 2e-2

    print("KERNEL_OK")
</pallas_src>

<mosaic_0001>
module attributes {stable_mosaic.version = 11 : i64} {
  func.func @_classifier_kernel(%arg0: memref<8x128xf32, #tpu.memory_space<vmem>>, %arg1: memref<128x1024xf32, #tpu.memory_space<vmem>>, %arg2: memref<1x1024xf32, #tpu.memory_space<vmem>>, %arg3: memref<8x640xf32, #tpu.memory_space<vmem>>) attributes {dimension_semantics = [], scalar_prefetch = 0 : i64, scratch_operands = 0 : i64, tpu.core_type = #tpu.core_type<tc>} {
    %c0 = arith.constant 0 : index
    %c0_0 = arith.constant 0 : index
    %0 = vector.load %arg0[%c0, %c0_0] : memref<8x128xf32, #tpu.memory_space<vmem>>, vector<8x128xf32>
    %c0_1 = arith.constant 0 : index
    %c0_2 = arith.constant 0 : index
    %1 = vector.load %arg1[%c0_1, %c0_2] : memref<128x1024xf32, #tpu.memory_space<vmem>>, vector<128x128xf32>
    %cst = arith.constant dense<0.000000e+00> : vector<8x128xf32>
    %2 = tpu.matmul %0, %1, %cst {dimension_numbers = #tpu.dot_dimension_numbers<[1], [0], [0], [1], [0, 0, 1, 1], [], []>} : vector<8x128xf32>, vector<128x128xf32>, vector<8x128xf32> -> vector<8x128xf32>
    %c0_3 = arith.constant 0 : index
    %c0_4 = arith.constant 0 : index
    %3 = vector.load %arg2[%c0_3, %c0_4] : memref<1x1024xf32, #tpu.memory_space<vmem>>, vector<1x128xf32>
    %4 = vector.broadcast %3 : vector<1x128xf32> to vector<8x128xf32>
    %5 = arith.addf %2, %4 : vector<8x128xf32>
    %cst_5 = arith.constant 0.000000e+00 : f32
    %6 = vector.broadcast %cst_5 : f32 to vector<8x128xf32>
    %7 = arith.maximumf %5, %6 : vector<8x128xf32>
    %c0_6 = arith.constant 0 : index
    %c128 = arith.constant 128 : index
    %8 = vector.load %arg1[%c0_6, %c128] : memref<128x1024xf32, #tpu.memory_space<vmem>>, vector<128x128xf32>
    %cst_7 = arith.constant dense<0.000000e+00> : vector<8x128xf32>
    %9 = tpu.matmul %7, %8, %cst_7 {dimension_numbers = #tpu.dot_dimension_numbers<[1], [0], [0], [1], [0, 0, 1, 1], [], []>} : vector<8x128xf32>, vector<128x128xf32>, vector<8x128xf32> -> vector<8x128xf32>
    %c0_8 = arith.constant 0 : index
    %c128_9 = arith.constant 128 : index
    %10 = vector.load %arg2[%c0_8, %c128_9] : memref<1x1024xf32, #tpu.memory_space<vmem>>, vector<1x128xf32>
    %11 = vector.broadcast %10 : vector<1x128xf32> to vector<8x128xf32>
    %12 = arith.addf %9, %11 : vector<8x128xf32>
    %cst_10 = arith.constant 0.000000e+00 : f32
    %13 = vector.broadcast %cst_10 : f32 to vector<8x128xf32>
    %14 = arith.maximumf %12, %13 : vector<8x128xf32>
    %c0_11 = arith.constant 0 : index
    %c256 = arith.constant 256 : index
    %15 = vector.load %arg1[%c0_11, %c256] : memref<128x1024xf32, #tpu.memory_space<vmem>>, vector<128x128xf32>
    %cst_12 = arith.constant dense<0.000000e+00> : vector<8x128xf32>
    %16 = tpu.matmul %14, %15, %cst_12 {dimension_numbers = #tpu.dot_dimension_numbers<[1], [0], [0], [1], [0, 0, 1, 1], [], []>} : vector<8x128xf32>, vector<128x128xf32>, vector<8x128xf32> -> vector<8x128xf32>
    %c0_13 = arith.constant 0 : index
    %c256_14 = arith.constant 256 : index
    %17 = vector.load %arg2[%c0_13, %c256_14] : memref<1x1024xf32, #tpu.memory_space<vmem>>, vector<1x128xf32>
    %18 = vector.broadcast %17 : vector<1x128xf32> to vector<8x128xf32>
    %19 = arith.addf %16, %18 : vector<8x128xf32>
    %cst_15 = arith.constant 0.000000e+00 : f32
    %20 = vector.broadcast %cst_15 : f32 to vector<8x128xf32>
    %21 = arith.maximumf %19, %20 : vector<8x128xf32>
    %c0_16 = arith.constant 0 : index
    %c384 = arith.constant 384 : index
    %22 = vector.load %arg1[%c0_16, %c384] : memref<128x1024xf32, #tpu.memory_space<vmem>>, vector<128x640xf32>
    %cst_17 = arith.constant dense<0.000000e+00> : vector<8x640xf32>
    %23 = tpu.matmul %21, %22, %cst_17 {dimension_numbers = #tpu.dot_dimension_numbers<[1], [0], [0], [1], [0, 0, 1, 1], [], []>} : vector<8x128xf32>, vector<128x640xf32>, vector<8x640xf32> -> vector<8x640xf32>
    %c0_18 = arith.constant 0 : index
    %c384_19 = arith.constant 384 : index
    %24 = vector.load %arg2[%c0_18, %c384_19] : memref<1x1024xf32, #tpu.memory_space<vmem>>, vector<1x640xf32>
    %25 = vector.broadcast %24 : vector<1x640xf32> to vector<8x640xf32>
    %26 = arith.addf %23, %25 : vector<8x640xf32>
    %cst_20 = arith.constant 0.000000e+00 : f32
    %27 = vector.broadcast %cst_20 : f32 to vector<8x640xf32>
    %28 = arith.subf %27, %26 : vector<8x640xf32>
    %29 = math.exp %28 : vector<8x640xf32>
    %cst_21 = arith.constant 1.000000e+00 : f32
    %30 = vector.broadcast %cst_21 : f32 to vector<8x640xf32>
    %31 = arith.addf %30, %29 : vector<8x640xf32>
    %32 = tpu.reciprocal %31 {approx = true} : vector<8x640xf32> -> vector<8x640xf32>
    %c0_22 = arith.constant 0 : index
    %c0_23 = arith.constant 0 : index
    %33 = vector.load %arg3[%c0_22, %c0_23] : memref<8x640xf32, #tpu.memory_space<vmem>>, vector<8x640xf32>
    tpu.vector_store %arg3[%c0_22, %c0_23], %32 {strides = array<i32>} : memref<8x640xf32, #tpu.memory_space<vmem>>, vector<8x640xf32>,
    return
  }
}

</mosaic_0001>

<llo_original>
// kernel: forward.1
$region0: #{forward.1}
  #allocation0 [shape = 'u32[]', space=smem, size = 0x4, offset = 0x4, fixed_abs, tag = 'smem constant byte address 0x4 - core index']
  #allocation1 [shape = 'u32[72,128]{1,0:T(1,128)}', space=vmem, size = 0x9000, scoped, tag = 'internal scratch']
  %s0 = inlined_call_operand.vmem [shape: f32[8,128], index: 0, kind: input, shape index: {}]
  %s1 = inlined_call_operand.hbm [shape: f32[128,1024], index: 1, kind: input, shape index: {}]
  %s2 = inlined_call_operand.vmem [shape: f32[1,1024], index: 2, kind: input, shape index: {}]
  %s3 = inlined_call_operand.vmem [shape: f32[8,640], index: 3, kind: output, shape index: {}]
  %s4 = sld [smem:[#allocation0]]
  $region26: #{forward.1} parent=0
    _
  %s6 = ssub.s32 1, %s4
  %s7 = scalar_select 0, %s6, %s4
  $region1: #{forward.1} parent=0
    #allocation2 [shape = 'u8[524288]{0}', space=vmem, size = 0x80000, scoped, tag = 'input window, operand 1, single buffered']
    #allocation3 [shape = 's32[1]{0}', space=sflag, size = 0x4, scoped, tag = 'scoped memory for forward.1']
    %8 = vsyncpa [#allocation3], 0
    // Predicated region
    $region2: #{forward.1} parent=1 // pred_check
      _
    $region3: #{forward.1} parent=1 // pred_check_branch
      %10 = sbr.rel (0) target = $region5
    $region4: #{forward.1} parent=1 // pred_region
      _
    $region5: #{forward.1} parent=1 // pred_fallthru
      _
    // Predicated region
    $region6: #{forward.1} parent=1 // pred_check
      _
    $region7: #{forward.1} parent=1 // pred_check_branch
      %12 = sbr.rel (0) target = $region9
    $region8: #{forward.1} parent=1 // pred_region
      %14 = vsyncadd [#allocation3], 0
      %s15 = sshll.u32 %s1, 4
      %s16 = int_to_ptr.hbm [resolvable:$true] %s15
      %s17 = sshll.u32 [#allocation2], 4
      %s18 = int_to_ptr.vmem [resolvable:$true] %s17
      %23 = dma.hbm_to_vmem [thread:$0]  %s16, 16384, %s18, [#allocation3], 1024, 1024, 64
    $region9: #{forward.1} parent=1 // pred_fallthru
      _
    // Predicated region
    $region10: #{forward.1} parent=1 // pred_check
      _
    $region11: #{forward.1} parent=1 // pred_check_branch
      %25 = sbr.rel (0) target = $region13
    $region12: #{forward.1} parent=1 // pred_region
      _
    $region13: #{forward.1} parent=1 // pred_fallthru
      _
    // Predicated region
    $region14: #{forward.1} parent=1 // pred_check
      _
    $region15: #{forward.1} parent=1 // pred_check_branch
      %27 = sbr.rel (0) target = $region17
    $region16: #{forward.1} parent=1 // pred_region
      %29 = dma.done [#allocation3], 16384
    $region17: #{forward.1} parent=1 // pred_fallthru
      _
    %v30 = vld [vmem:[%s0] sm:$0xff]
    %v31 = vld [vmem:[#allocation2] sm:$0xff]
    %v32 = vld [vmem:[#allocation2 + $0x40] sm:$0xff]
    %v33 = vld [vmem:[#allocation2 + $0x80] sm:$0xff]
    %v34 = vld [vmem:[#allocation2 + $0xc0] sm:$0xff]
    %v35 = vld [vmem:[#allocation2 + $0x100] sm:$0xff]
    %v36 = vld [vmem:[#allocation2 + $0x140] sm:$0xff]
    %v37 = vld [vmem:[#allocation2 + $0x180] sm:$0xff]
    %v38 = vld [vmem:[#allocation2 + $0x1c0] sm:$0xff]
    %v39 = vld [vmem:[#allocation2 + $0x200] sm:$0xff]
    %v40 = vld [vmem:[#allocation2 + $0x240] sm:$0xff]
    %v41 = vld [vmem:[#allocation2 + $0x280] sm:$0xff]
    %v42 = vld [vmem:[#allocation2 + $0x2c0] sm:$0xff]
    %v43 = vld [vmem:[#allocation2 + $0x300] sm:$0xff]
    %v44 = vld [vmem:[#allocation2 + $0x340] sm:$0xff]
    %v45 = vld [vmem:[#allocation2 + $0x380] sm:$0xff]
    %v46 = vld [vmem:[#allocation2 + $0x3c0] sm:$0xff]
    %v47 = vld [vmem:[%s2] sm:$0x1]
    %v49 = vperm.slane %v47, 0
    %51 = vmatpush.msra.mxu0 %v46
    %52 = vmatpush.msra.mxu0 %v45
    %53 = vmatpush.msra.mxu0 %v44
    %54 = vmatpush.msra.mxu0 %v43
    %55 = vmatpush.msra.mxu0 %v42
    %56 = vmatpush.msra.mxu0 %v41
    %57 = vmatpush.msra.mxu0 %v40
    %58 = vmatpush.msra.mxu0 %v39
    %59 = vmatpush.msra.mxu0 %v38
    %60 = vmatpush.msra.mxu0 %v37
    %61 = vmatpush.msra.mxu0 %v36
    %62 = vmatpush.msra.mxu0 %v35
    %63 = vmatpush.msra.mxu0 %v34
    %64 = vmatpush.msra.mxu0 %v33
    %65 = vmatpush.msra.mxu0 %v32
    %66 = vmatpush.msra.mxu0 %v31
    %67 = vmatmul.f32.gmra.mxu0 %v30
    %v68 = vpop.f32.mrf.mxu0
    %v69 = vadd.f32 %v49, %v68
    %70 = vdwg.mxu0
    %v71 = vmax.f32 %v69, 0.0
    %v72 = vld [vmem:[#allocation2 + $0x8] sm:$0xff]
    %v73 = vld [vmem:[#allocation2 + $0x48] sm:$0xff]
    %v74 = vld [vmem:[#allocation2 + $0x88] sm:$0xff]
    %v75 = vld [vmem:[#allocation2 + $0xc8] sm:$0xff]
    %v76 = vld [vmem:[#allocation2 + $0x108] sm:$0xff]
    %v77 = vld [vmem:[#allocation2 + $0x148] sm:$0xff]
    %v78 = vld [vmem:[#allocation2 + $0x188] sm:$0xff]
    %v79 = vld [vmem:[#allocation2 + $0x1c8] sm:$0xff]
    %v80 = vld [vmem:[#allocation2 + $0x208] sm:$0xff]
    %v81 = vld [vmem:[#allocation2 + $0x248] sm:$0xff]
    %v82 = vld [vmem:[#allocation2 + $0x288] sm:$0xff]
    %v83 = vld [vmem:[#allocation2 + $0x2c8] sm:$0xff]
    %v84 = vld [vmem:[#allocation2 + $0x308] sm:$0xff]
    %v85 = vld [vmem:[#allocation2 + $0x348] sm:$0xff]
    %v86 = vld [vmem:[#allocation2 + $0x388] sm:$0xff]
    %v87 = vld [vmem:[#allocation2 + $0x3c8] sm:$0xff]
    %v88 = vld [vmem:[%s2 + $0x1] sm:$0x1]
    %v90 = vperm.slane %v88, 0
    %92 = vmatpush.msra.mxu0 %v87
    %93 = vmatpush.msra.mxu0 %v86
    %94 = vmatpush.msra.mxu0 %v85
    %95 = vmatpush.msra.mxu0 %v84
    %96 = vmatpush.msra.mxu0 %v83
    %97 = vmatpush.msra.mxu0 %v82
    %98 = vmatpush.msra.mxu0 %v81
    %99 = vmatpush.msra.mxu0 %v80
    %100 = vmatpush.msra.mxu0 %v79
    %101 = vmatpush.msra.mxu0 %v78
    %102 = vmatpush.msra.mxu0 %v77
    %103 = vmatpush.msra.mxu0 %v76
    %104 = vmatpush.msra.mxu0 %v75
    %105 = vmatpush.msra.mxu0 %v74
    %106 = vmatpush.msra.mxu0 %v73
    %107 = vmatpush.msra.mxu0 %v72
    %108 = vmatmul.f32.gmra.mxu0 %v71
    %v109 = vpop.f32.mrf.mxu0
    %v110 = vadd.f32 %v90, %v109
    %111 = vdwg.mxu0
    %v112 = vmax.f32 %v110, 0.0
    %v113 = vld [vmem:[#allocation2 + $0x10] sm:$0xff]
    %v114 = vld [vmem:[#allocation2 + $0x50] sm:$0xff]
    %v115 = vld [vmem:[#allocation2 + $0x90] sm:$0xff]
    %v116 = vld [vmem:[#allocation2 + $0xd0] sm:$0xff]
    %v117 = vld [vmem:[#allocation2 + $0x110] sm:$0xff]
    %v118 = vld [vmem:[#allocation2 + $0x150] sm:$0xff]
    %v119 = vld [vmem:[#allocation2 + $0x190] sm:$0xff]
    %v120 = vld [vmem:[#allocation2 + $0x1d0] sm:$0xff]
    %v121 = vld [vmem:[#allocation2 + $0x210] sm:$0xff]
    %v122 = vld [vmem:[#allocation2 + $0x250] sm:$0xff]
    %v123 = vld [vmem:[#allocation2 + $0x290] sm:$0xff]
    %v124 = vld [vmem:[#allocation2 + $0x2d0] sm:$0xff]
    %v125 = vld [vmem:[#allocation2 + $0x310] sm:$0xff]
    %v126 = vld [vmem:[#allocation2 + $0x350] sm:$0xff]
    %v127 = vld [vmem:[#allocation2 + $0x390] sm:$0xff]
    %v128 = vld [vmem:[#allocation2 + $0x3d0] sm:$0xff]
    %v129 = vld [vmem:[%s2 + $0x2] sm:$0x1]
    %v131 = vperm.slane %v129, 0
    %133 = vmatpush.msra.mxu0 %v128
    %134 = vmatpush.msra.mxu0 %v127
    %135 = vmatpush.msra.mxu0 %v126
    %136 = vmatpush.msra.mxu0 %v125
    %137 = vmatpush.msra.mxu0 %v124
    %138 = vmatpush.msra.mxu0 %v123
    %139 = vmatpush.msra.mxu0 %v122
    %140 = vmatpush.msra.mxu0 %v121
    %141 = vmatpush.msra.mxu0 %v120
    %142 = vmatpush.msra.mxu0 %v119
    %143 = vmatpush.msra.mxu0 %v118
    %144 = vmatpush.msra.mxu0 %v117
    %145 = vmatpush.msra.mxu0 %v116
    %146 = vmatpush.msra.mxu0 %v115
    %147 = vmatpush.msra.mxu0 %v114
    %148 = vmatpush.msra.mxu0 %v113
    %149 = vmatmul.f32.gmra.mxu0 %v112
    %v150 = vpop.f32.mrf.mxu0
    %v151 = vadd.f32 %v131, %v150
    %152 = vdwg.mxu0
    %v153 = vmax.f32 %v151, 0.0
    %v154 = vld [vmem:[#allocation2 + $0x18] sm:$0xff]
    %v155 = vld [vmem:[#allocation2 + $0x20] sm:$0xff]
    %v156 = vld [vmem:[#allocation2 + $0x28] sm:$0xff]
    %v157 = vld [vmem:[#allocation2 + $0x30] sm:$0xff]
    %v158 = vld [vmem:[#allocation2 + $0x38] sm:$0xff]
    %v159 = vld [vmem:[#allocation2 + $0x58] sm:$0xff]
    %v160 = vld [vmem:[#allocation2 + $0x60] sm:$0xff]
    %v161 = vld [vmem:[#allocation2 + $0x68] sm:$0xff]
    %v162 = vld [vmem:[#allocation2 + $0x70] sm:$0xff]
    %v163 = vld [vmem:[#allocation2 + $0x78] sm:$0xff]
    %v164 = vld [vmem:[#allocation2 + $0x98] sm:$0xff]
    %v165 = vld [vmem:[#allocation2 + $0xa0] sm:$0xff]
    %v166 = vld [vmem:[#allocation2 + $0xa8] sm:$0xff]
    %v167 = vld [vmem:[#allocation2 + $0xb0] sm:$0xff]
    %v168 = vld [vmem:[#allocation2 + $0xb8] sm:$0xff]
    %v169 = vld [vmem:[#allocation2 + $0xd8] sm:$0xff]
    %v170 = vld [vmem:[#allocation2 + $0xe0] sm:$0xff]
    %v171 = vld [vmem:[#allocation2 + $0xe8] sm:$0xff]
    %v172 = vld [vmem:[#allocation2 + $0xf0] sm:$0xff]
    %v173 = vld [vmem:[#allocation2 + $0xf8] sm:$0xff]
    %v174 = vld [vmem:[#allocation2 + $0x118] sm:$0xff]
    %v175 = vld [vmem:[#allocation2 + $0x120] sm:$0xff]
    %v176 = vld [vmem:[#allocation2 + $0x128] sm:$0xff]
    %v177 = vld [vmem:[#allocation2 + $0x130] sm:$0xff]
    %v178 = vld [vmem:[#allocation2 + $0x138] sm:$0xff]
    %v179 = vld [vmem:[#allocation2 + $0x158] sm:$0xff]
    %v180 = vld [vmem:[#allocation2 + $0x160] sm:$0xff]
    %v181 = vld [vmem:[#allocation2 + $0x168] sm:$0xff]
    %v182 = vld [vmem:[#allocation2 + $0x170] sm:$0xff]
    %v183 = vld [vmem:[#allocation2 + $0x178] sm:$0xff]
    %v184 = vld [vmem:[#allocation2 + $0x198] sm:$0xff]
    %v185 = vld [vmem:[#allocation2 + $0x1a0] sm:$0xff]
    %v186 = vld [vmem:[#allocation2 + $0x1a8] sm:$0xff]
    %v187 = vld [vmem:[#allocation2 + $0x1b0] sm:$0xff]
    %v188 = vld [vmem:[#allocation2 + $0x1b8] sm:$0xff]
    %v189 = vld [vmem:[#allocation2 + $0x1d8] sm:$0xff]
    %v190 = vld [vmem:[#allocation2 + $0x1e0] sm:$0xff]
    %v191 = vld [vmem:[#allocation2 + $0x1e8] sm:$0xff]
    %v192 = vld [vmem:[#allocation2 + $0x1f0] sm:$0xff]
    %v193 = vld [vmem:[#allocation2 + $0x1f8] sm:$0xff]
    %v194 = vld [vmem:[#allocation2 + $0x218] sm:$0xff]
    %v195 = vld [vmem:[#allocation2 + $0x220] sm:$0xff]
    %v196 = vld [vmem:[#allocation2 + $0x228] sm:$0xff]
    %v197 = vld [vmem:[#allocation2 + $0x230] sm:$0xff]
    %v198 = vld [vmem:[#allocation2 + $0x238] sm:$0xff]
    %v199 = vld [vmem:[#allocation2 + $0x258] sm:$0xff]
    %v200 = vld [vmem:[#allocation2 + $0x260] sm:$0xff]
    %v201 = vld [vmem:[#allocation2 + $0x268] sm:$0xff]
    %v202 = vld [vmem:[#allocation2 + $0x270] sm:$0xff]
    %v203 = vld [vmem:[#allocation2 + $0x278] sm:$0xff]
    %v204 = vld [vmem:[#allocation2 + $0x298] sm:$0xff]
    %v205 = vld [vmem:[#allocation2 + $0x2a0] sm:$0xff]
    %v206 = vld [vmem:[#allocation2 + $0x2a8] sm:$0xff]
    %v207 = vld [vmem:[#allocation2 + $0x2b0] sm:$0xff]
    %v208 = vld [vmem:[#allocation2 + $0x2b8] sm:$0xff]
    %v209 = vld [vmem:[#allocation2 + $0x2d8] sm:$0xff]
    %v210 = vld [vmem:[#allocation2 + $0x2e0] sm:$0xff]
    %v211 = vld [vmem:[#allocation2 + $0x2e8] sm:$0xff]
    %v212 = vld [vmem:[#allocation2 + $0x2f0] sm:$0xff]
    %v213 = vld [vmem:[#allocation2 + $0x2f8] sm:$0xff]
    %v214 = vld [vmem:[#allocation2 + $0x318] sm:$0xff]
    %v215 = vld [vmem:[#allocation2 + $0x320] sm:$0xff]
    %v216 = vld [vmem:[#allocation2 + $0x328] sm:$0xff]
    %v217 = vld [vmem:[#allocation2 + $0x330] sm:$0xff]
    %v218 = vld [vmem:[#allocation2 + $0x338] sm:$0xff]
    %v219 = vld [vmem:[#allocation2 + $0x358] sm:$0xff]
    %v220 = vld [vmem:[#allocation2 + $0x360] sm:$0xff]
    %v221 = vld [vmem:[#allocation2 + $0x368] sm:$0xff]
    %v222 = vld [vmem:[#allocation2 + $0x370] sm:$0xff]
    %v223 = vld [vmem:[#allocation2 + $0x378] sm:$0xff]
    %v224 = vld [vmem:[#allocation2 + $0x398] sm:$0xff]
    %v225 = vld [vmem:[#allocation2 + $0x3a0] sm:$0xff]
    %v226 = vld [vmem:[#allocation2 + $0x3a8] sm:$0xff]
    %v227 = vld [vmem:[#allocation2 + $0x3b0] sm:$0xff]
    %v228 = vld [vmem:[#allocation2 + $0x3b8] sm:$0xff]
    %v229 = vld [vmem:[#allocation2 + $0x3d8] sm:$0xff]
    %v230 = vld [vmem:[#allocation2 + $0x3e0] sm:$0xff]
    %v231 = vld [vmem:[#allocation2 + $0x3e8] sm:$0xff]
    %v232 = vld [vmem:[#allocation2 + $0x3f0] sm:$0xff]
    %v233 = vld [vmem:[#allocation2 + $0x3f8] sm:$0xff]
    %v234 = vld [vmem:[%s2 + $0x3] sm:$0x1f]
    %v236 = vperm.slane %v234, 0
    %v237 = vperm.slane %v234, 1
    %v238 = vperm.slane %v234, 2
    %v239 = vperm.slane %v234, 3
    %v240 = vperm.slane %v234, 4
    %246 = vmatpush.msra.mxu0 %v229
    %247 = vmatpush.msra.mxu0 %v224
    %248 = vmatpush.msra.mxu0 %v219
    %249 = vmatpush.msra.mxu0 %v214
    %250 = vmatpush.msra.mxu0 %v209
    %251 = vmatpush.msra.mxu0 %v204
    %252 = vmatpush.msra.mxu0 %v199
    %253 = vmatpush.msra.mxu0 %v194
    %254 = vmatpush.msra.mxu0 %v189
    %255 = vmatpush.msra.mxu0 %v184
    %256 = vmatpush.msra.mxu0 %v179
    %257 = vmatpush.msra.mxu0 %v174
    %258 = vmatpush.msra.mxu0 %v169
    %259 = vmatpush.msra.mxu0 %v164
    %260 = vmatpush.msra.mxu0 %v159
    %261 = vmatpush.msra.mxu0 %v154
    %262 = vmatmul.f32.gmra.mxu0 %v153
    %v263 = vpop.f32.mrf.mxu0
    %v264 = vadd.f32 %v236, %v263
    %265 = vdwg.mxu0
    %266 = vmatpush.msra.mxu0 %v230
    %267 = vmatpush.msra.mxu0 %v225
    %268 = vmatpush.msra.mxu0 %v220
    %269 = vmatpush.msra.mxu0 %v215
    %270 = vmatpush.msra.mxu0 %v210
    %271 = vmatpush.msra.mxu0 %v205
    %272 = vmatpush.msra.mxu0 %v200
    %273 = vmatpush.msra.mxu0 %v195
    %274 = vmatpush.msra.mxu0 %v190
    %275 = vmatpush.msra.mxu0 %v185
    %276 = vmatpush.msra.mxu0 %v180
    %277 = vmatpush.msra.mxu0 %v175
    %278 = vmatpush.msra.mxu0 %v170
    %279 = vmatpush.msra.mxu0 %v165
    %280 = vmatpush.msra.mxu0 %v160
    %281 = vmatpush.msra.mxu0 %v155
    %282 = vmatmul.f32.gmra.mxu0 %v153
    %v283 = vpop.f32.mrf.mxu0
    %v284 = vadd.f32 %v237, %v283
    %285 = vdwg.mxu0
    %286 = vmatpush.msra.mxu0 %v231
    %287 = vmatpush.msra.mxu0 %v226
    %288 = vmatpush.msra.mxu0 %v221
    %289 = vmatpush.msra.mxu0 %v216
    %290 = vmatpush.msra.mxu0 %v211
    %291 = vmatpush.msra.mxu0 %v206
    %292 = vmatpush.msra.mxu0 %v201
    %293 = vmatpush.msra.mxu0 %v196
    %294 = vmatpush.msra.mxu0 %v191
    %295 = vmatpush.msra.mxu0 %v186
    %296 = vmatpush.msra.mxu0 %v181
    %297 = vmatpush.msra.mxu0 %v176
    %298 = vmatpush.msra.mxu0 %v171
    %299 = vmatpush.msra.mxu0 %v166
    %300 = vmatpush.msra.mxu0 %v161
    %301 = vmatpush.msra.mxu0 %v156
    %302 = vmatmul.f32.gmra.mxu0 %v153
    %v303 = vpop.f32.mrf.mxu0
    %v304 = vadd.f32 %v238, %v303
    %305 = vdwg.mxu0
    %306 = vmatpush.msra.mxu0 %v232
    %307 = vmatpush.msra.mxu0 %v227
    %308 = vmatpush.msra.mxu0 %v222
    %309 = vmatpush.msra.mxu0 %v217
    %310 = vmatpush.msra.mxu0 %v212
    %311 = vmatpush.msra.mxu0 %v207
    %312 = vmatpush.msra.mxu0 %v202
    %313 = vmatpush.msra.mxu0 %v197
    %314 = vmatpush.msra.mxu0 %v192
    %315 = vmatpush.msra.mxu0 %v187
    %316 = vmatpush.msra.mxu0 %v182
    %317 = vmatpush.msra.mxu0 %v177
    %318 = vmatpush.msra.mxu0 %v172
    %319 = vmatpush.msra.mxu0 %v167
    %320 = vmatpush.msra.mxu0 %v162
    %321 = vmatpush.msra.mxu0 %v157
    %322 = vmatmul.f32.gmra.mxu0 %v153
    %v323 = vpop.f32.mrf.mxu0
    %v324 = vadd.f32 %v239, %v323
    %325 = vdwg.mxu0
    %326 = vmatpush.msra.mxu0 %v233
    %327 = vmatpush.msra.mxu0 %v228
    %328 = vmatpush.msra.mxu0 %v223
    %329 = vmatpush.msra.mxu0 %v218
    %330 = vmatpush.msra.mxu0 %v213
    %331 = vmatpush.msra.mxu0 %v208
    %332 = vmatpush.msra.mxu0 %v203
    %333 = vmatpush.msra.mxu0 %v198
    %334 = vmatpush.msra.mxu0 %v193
    %335 = vmatpush.msra.mxu0 %v188
    %336 = vmatpush.msra.mxu0 %v183
    %337 = vmatpush.msra.mxu0 %v178
    %338 = vmatpush.msra.mxu0 %v173
    %339 = vmatpush.msra.mxu0 %v168
    %340 = vmatpush.msra.mxu0 %v163
    %341 = vmatpush.msra.mxu0 %v158
    %342 = vmatmul.f32.gmra.mxu0 %v153
    %v343 = vpop.f32.mrf.mxu0
    %v344 = vadd.f32 %v240, %v343
    %345 = vdwg.mxu0
    %v346 = vsub.f32 0.0, %v264
    %v347 = vsub.f32 0.0, %v284
    %v348 = vsub.f32 0.0, %v304
    %v349 = vsub.f32 0.0, %v324
    %v350 = vsub.f32 0.0, %v344
    %v351 = vmul.f32 %v346, 1.442695
    %v352 = vpow.pop %v351
    %v353 = vmul.f32 %v347, 1.442695
    %v354 = vpow.pop %v353
    %v355 = vmul.f32 %v348, 1.442695
    %v356 = vpow.pop %v355
    %v357 = vmul.f32 %v349, 1.442695
    %v358 = vpow.pop %v357
    %v359 = vmul.f32 %v350, 1.442695
    %v360 = vpow.pop %v359
    %v361 = vadd.f32 %v352, 1.0
    %v362 = vadd.f32 %v354, 1.0
    %v363 = vadd.f32 %v356, 1.0
    %v364 = vadd.f32 %v358, 1.0
    %v365 = vadd.f32 %v360, 1.0
    %v366 = vrcp.pop %v361
    %v367 = vrcp.pop %v362
    %v368 = vrcp.pop %v363
    %v369 = vrcp.pop %v364
    %v370 = vrcp.pop %v365
    %371 = vst [vmem:[%s3] sm:$0xff] %v366
    %372 = vst [vmem:[%s3 + $0x8] sm:$0xff] %v367
    %373 = vst [vmem:[%s3 + $0x10] sm:$0xff] %v368
    %374 = vst [vmem:[%s3 + $0x18] sm:$0xff] %v369
    %375 = vst [vmem:[%s3 + $0x20] sm:$0xff] %v370
    // Predicated region
    $region18: #{forward.1} parent=1 // pred_check
      _
    $region19: #{forward.1} parent=1 // pred_check_branch
      %377 = sbr.rel (0) target = $region21
    $region20: #{forward.1} parent=1 // pred_region
      _
    $region21: #{forward.1} parent=1 // pred_fallthru
      _
    // Predicated region
    $region22: #{forward.1} parent=1 // pred_check
      _
    $region23: #{forward.1} parent=1 // pred_check_branch
      %379 = sbr.rel (0) target = $region25
    $region24: #{forward.1} parent=1 // pred_region
      _
    $region25: #{forward.1} parent=1 // pred_fallthru
      _
    %380 = vsyncpa [#allocation3], 1

</llo_original>
